<compile_context>
chip_gen: v7x
topology: tpu7x:2x2x1
jax: 0.10.0
libtpu: 0.0.40
codegen_flags: <defaults>
</compile_context>

<pallas_src>
from functools import partial

import jax
import jax.numpy as jnp
from jax.experimental import pallas as pl
from jax.experimental.pallas import tpu as pltpu


# --------------------------------------------------------------------------
# tiling helpers
# --------------------------------------------------------------------------
def _pick_tile(dim, target, align):
    """Largest tile <= target that divides `dim` and is a multiple of `align`.
    Falls back to the full dim (always a legal Mosaic block extent)."""
    if dim <= target:
        return dim
    t = (min(target, dim) // align) * align
    while t >= align:
        if dim % t == 0:
            return t
        t -= align
    return dim


def _choose_attn_tiles(S, H, num_heads, out_bytes, budget_bytes=16 * 1024 * 1024):
    """Pick (tq, tkv) so the double-buffered block + scratch footprint fits the
    budget.  tq is kept <= S//2 when possible so the 'parallel' q grid axis has
    >= 2 blocks (keeps both v7x TensorCores busy); tkv is made as large as the
    budget allows (fills the MXU and minimizes K/V re-streaming)."""

    def vmem_bytes(tq, tkv):
        stats = 2 * num_heads * (-(-tq // 8) * 8) * 128 * 4    # m + l, lane-padded
        return (2 * tq * H * 2            # q blocks (double-buffered, bf16)
                + 4 * tkv * H * 2         # k + v blocks (double-buffered, bf16)
                + 2 * tq * H * out_bytes  # out blocks
                + tq * H * 2              # scaled-q scratch (bf16)
                + tq * H * 4              # f32 accumulator
                + stats)

    tq = _pick_tile(S, 512, 16)
    if S // tq < 2 and S >= 32:
        tq2 = _pick_tile(S, S // 2, 16)
        if S % tq2 == 0 and S // tq2 >= 2:
            tq = tq2
    tkv = _pick_tile(S, 512, 16)
    while vmem_bytes(tq, tkv) > budget_bytes:
        new_tkv = _pick_tile(S, max(16, tkv // 2), 16)
        if new_tkv < tkv:
            tkv = new_tkv
            continue
        new_tq = _pick_tile(S, max(16, tq // 2), 16)
        if new_tq < tq:
            tq = new_tq
            continue
        break
    return tq, tkv


# --------------------------------------------------------------------------
# Tiled linear:  y = x @ W + b   (bf16 HBM streams, f32 accumulation, bf16 out)
# --------------------------------------------------------------------------
def _linear_bias_kernel(x_ref, w_ref, b_ref, o_ref, acc_ref):
    k = pl.program_id(2)

    @pl.when(k == 0)
    def _():
        acc_ref[...] = jnp.zeros_like(acc_ref)

    acc_ref[...] += jnp.dot(x_ref[...], w_ref[...],
                            preferred_element_type=jnp.float32)

    @pl.when(k == pl.num_programs(2) - 1)
    def _():
        o_ref[...] = (acc_ref[...] + b_ref[...]).astype(o_ref.dtype)


def linear(x, w, b, *, tm=512, tn=512, tk=1024, out_dtype=jnp.bfloat16):
    M, K = x.shape
    K2, N = w.shape
    assert K == K2
    x = x.astype(jnp.bfloat16)          # activations streamed as bf16
    w = w.astype(jnp.bfloat16)          # no-op when weights are stored bf16
    b2 = b.astype(jnp.float32).reshape(1, N)
    tm = _pick_tile(M, tm, 16)          # tm == M for seq <= 512: W streamed once
    tn = _pick_tile(N, tn, 128)
    tk = _pick_tile(K, tk, 128)
    grid = (M // tm, N // tn, K // tk)  # reduction (K) axis last
    return pl.pallas_call(
        _linear_bias_kernel,
        grid_spec=pltpu.PrefetchScalarGridSpec(
            num_scalar_prefetch=0,
            grid=grid,
            in_specs=[
                pl.BlockSpec((tm, tk), lambda i, j, k: (i, k)),
                pl.BlockSpec((tk, tn), lambda i, j, k: (k, j)),
                pl.BlockSpec((1, tn), lambda i, j, k: (0, j)),
            ],
            out_specs=pl.BlockSpec((tm, tn), lambda i, j, k: (i, j)),
            scratch_shapes=[pltpu.VMEM((tm, tn), jnp.float32)],
        ),
        out_shape=jax.ShapeDtypeStruct((M, N), out_dtype),
        compiler_params=pltpu.CompilerParams(
            dimension_semantics=("parallel", "parallel", "arbitrary")),
    )(x, w, b2)


# --------------------------------------------------------------------------
# Flash-style multi-head attention (full / unmasked, encoder-only)
#   * q/k/v blocks come straight from the fused [S,3H] qkv buffer (column-block
#     index_maps), so no wrapper slices / extra HBM copies.
#   * Heads processed in 128-lane groups (pairs for head_dim=64); accumulator is
#     lane-dense [tq, H]; online softmax stats (m, l) stay per-head in f32.
# --------------------------------------------------------------------------
def _flash_attn_kernel(q_ref, k_ref, v_ref, o_ref, qs_ref, m_sc, l_sc, acc_sc,
                       *, num_heads, head_dim, scale):
    kv_idx = pl.program_id(1)
    tq, H = acc_sc.shape

    # heads per 128-lane group (e.g. 2 for head_dim=64)
    hpg = max(1, 128 // head_dim)
    hpg = min(hpg, num_heads)
    while num_heads % hpg:
        hpg -= 1
    gw = hpg * head_dim
    num_groups = num_heads // hpg

    @pl.when(kv_idx == 0)
    def _():
        m_sc[...] = jnp.full(m_sc.shape, -jnp.inf, dtype=m_sc.dtype)
        l_sc[...] = jnp.zeros(l_sc.shape, dtype=l_sc.dtype)
        acc_sc[...] = jnp.zeros(acc_sc.shape, dtype=acc_sc.dtype)
        # Scale + pack q to bf16 once per q tile (reused for every kv step).
        qs_ref[...] = (q_ref[...].astype(jnp.float32) * scale).astype(jnp.bfloat16)

    for g in range(num_groups):
        cols = slice(g * gw, (g + 1) * gw)
        q_g = qs_ref[:, cols]                             # (tq, gw)  bf16, pre-scaled
        k_g = k_ref[:, cols].astype(jnp.bfloat16)         # (tkv, gw)
        v_g = v_ref[:, cols].astype(jnp.bfloat16)         # (tkv, gw)

        alphas, pvs = [], []
        for hh in range(hpg):
            h = g * hpg + hh
            hs = slice(hh * head_dim, (hh + 1) * head_dim)
            # scores (tq, tkv): contraction over head_dim ("nt" matmul on MXU)
            s = jax.lax.dot_general(
                q_g[:, hs], k_g[:, hs], (((1,), (1,)), ((), ())),
                preferred_element_type=jnp.float32)
            m_prev = m_sc[h]                               # (tq, 1)
            m_new = jnp.maximum(m_prev, jnp.max(s, axis=-1, keepdims=True))
            alpha = jnp.exp(m_prev - m_new)                # (tq, 1)
            p = jnp.exp(s - m_new)                         # (tq, tkv)
            l_sc[h] = alpha * l_sc[h] + jnp.sum(p, axis=-1, keepdims=True)
            m_sc[h] = m_new
            alphas.append(alpha)
            pvs.append(jnp.dot(p.astype(jnp.bfloat16), v_g[:, hs],
                               preferred_element_type=jnp.float32))

        # One lane-dense accumulator update per 128-lane head group.
        alpha_g = jnp.concatenate(
            [jnp.broadcast_to(a, (tq, head_dim)) for a in alphas], axis=-1)
        pv_g = jnp.concatenate(pvs, axis=-1)
        acc_sc[:, cols] = alpha_g * acc_sc[:, cols] + pv_g

    @pl.when(kv_idx == pl.num_programs(1) - 1)
    def _():
        inv_l = jnp.concatenate(
            [jnp.broadcast_to(pl.reciprocal(l_sc[h], approx=False), (tq, head_dim))
             for h in range(num_heads)], axis=-1)          # (tq, H)
        o_ref[...] = (acc_sc[...] * inv_l).astype(o_ref.dtype)


def mha_attention(q_src, k_src, v_src, *, hidden_size, num_heads, scale,
                  q_col=0, k_col=0, v_col=0, out_dtype=jnp.float32,
                  tq=None, tkv=None):
    S = q_src.shape[0]
    H = hidden_size
    head_dim = H // num_heads
    assert head_dim * num_heads == H
    out_bytes = jnp.dtype(out_dtype).itemsize
    if tq is None or tkv is None:
        atq, atkv = _choose_attn_tiles(S, H, num_heads, out_bytes)
        tq = tq or atq
        tkv = tkv or atkv
    assert S % tq == 0 and S % tkv == 0
    grid = (S // tq, S // tkv)          # reduction (kv) axis last
    kernel = partial(_flash_attn_kernel, num_heads=num_heads,
                     head_dim=head_dim, scale=scale)
    return pl.pallas_call(
        kernel,
        grid_spec=pltpu.PrefetchScalarGridSpec(
            num_scalar_prefetch=0,
            grid=grid,
            in_specs=[
                pl.BlockSpec((tq, H), lambda i, j: (i, q_col)),
                pl.BlockSpec((tkv, H), lambda i, j: (j, k_col)),
                pl.BlockSpec((tkv, H), lambda i, j: (j, v_col)),
            ],
            out_specs=pl.BlockSpec((tq, H), lambda i, j: (i, 0)),
            scratch_shapes=[
                pltpu.VMEM((tq, H), jnp.bfloat16),            # scaled q (bf16)
                pltpu.VMEM((num_heads, tq, 1), jnp.float32),  # m (running max)
                pltpu.VMEM((num_heads, tq, 1), jnp.float32),  # l (running sum)
                pltpu.VMEM((tq, H), jnp.float32),             # acc (lane-dense)
            ],
        ),
        out_shape=jax.ShapeDtypeStruct((S, H), out_dtype),
        compiler_params=pltpu.CompilerParams(
            dimension_semantics=("parallel", "arbitrary"),
            vmem_limit_bytes=32 * 1024 * 1024),
    )(q_src, k_src, v_src)


# --------------------------------------------------------------------------
# BertSelfAttention forward
# --------------------------------------------------------------------------
def init_bert_self_attention_params(key, hidden_size):
    k_w, k_b = jax.random.split(key)
    s = 0.02
    w = jax.random.normal(k_w, (hidden_size, 3 * hidden_size), jnp.float32) * s
    b = jax.random.normal(k_b, (3 * hidden_size,), jnp.float32) * s
    # Weights stored bf16 in HBM: halves the dominant DMA stream of the QKV
    # projection (MXU operands are bf16 anyway); bias stays f32.
    return {"w_qkv": w.astype(jnp.bfloat16), "b_qkv": b}


def bert_self_attention_forward(hidden_states, params, num_heads, attn_tiles=None):
    # TODO(synk): kv_cache / AttentionMetadata plumbing is not modeled; the
    # ENCODER_ONLY path never reads or writes the KV cache.
    S, H = hidden_states.shape
    head_dim = H // num_heads
    scale = head_dim ** -0.5
    tq, tkv = attn_tiles if attn_tiles is not None else (None, None)

    qkv = linear(hidden_states, params["w_qkv"], params["b_qkv"])   # [S, 3H] bf16

    if H % 128 == 0:
        # Read q/k/v straight out of the fused qkv buffer via column-block
        # index_maps -- no wrapper slices, no extra HBM copies.
        return mha_attention(qkv, qkv, qkv, hidden_size=H, num_heads=num_heads,
                             scale=scale, q_col=0, k_col=1, v_col=2,
                             out_dtype=hidden_states.dtype, tq=tq, tkv=tkv)
    # Fallback for non-lane-aligned hidden sizes (block last dim must then equal
    # the full array dim): slice in the wrapper.
    q, k, v = qkv[:, :H], qkv[:, H:2 * H], qkv[:, 2 * H:]
    return mha_attention(q, k, v, hidden_size=H, num_heads=num_heads,
                         scale=scale, out_dtype=hidden_states.dtype,
                         tq=tq, tkv=tkv)


# --------------------------------------------------------------------------
# pure-JAX reference (sanity check at test shapes)
# --------------------------------------------------------------------------
def _reference(hidden_states, params, num_heads):
    S, H = hidden_states.shape
    hd = H // num_heads
    w = params["w_qkv"].astype(jnp.float32)
    qkv = hidden_states @ w + params["b_qkv"]
    q, k, v = jnp.split(qkv, [H, 2 * H], axis=-1)
    q = q.reshape(S, num_heads, hd).transpose(1, 0, 2)
    k = k.reshape(S, num_heads, hd).transpose(1, 0, 2)
    v = v.reshape(S, num_heads, hd).transpose(1, 0, 2)
    s = jnp.einsum("hqd,hkd->hqk", q, k) * (hd ** -0.5)
    p = jax.nn.softmax(s, axis=-1)
    o = jnp.einsum("hqk,hkd->hqd", p, v)
    return o.transpose(1, 0, 2).reshape(S, H)


# --------------------------------------------------------------------------
if __name__ == "__main__":
    SEQ = 32
    HIDDEN = 128            # 2 heads x head_dim 64 (lane-aligned, like real BERT)
    NUM_HEADS = 2

    key = jax.random.PRNGKey(0)
    k_in, k_params = jax.random.split(key)
    hidden_states = jax.random.normal(k_in, (SEQ, HIDDEN), jnp.float32)
    params = init_bert_self_attention_params(k_params, HIDDEN)

    out = bert_self_attention_forward(hidden_states, params, NUM_HEADS)
    out = jax.block_until_ready(out)
    assert out.shape == (SEQ, HIDDEN) and out.dtype == jnp.float32

    ref = _reference(hidden_states, params, NUM_HEADS)
    assert jnp.allclose(out, ref, atol=2e-2, rtol=2e-2), \
        float(jnp.max(jnp.abs(out - ref)))

    # Also exercise the multi-kv-step online-softmax path with forced small tiles.
    out_small = bert_self_attention_forward(hidden_states, params, NUM_HEADS,
                                            attn_tiles=(16, 16))
    out_small = jax.block_until_ready(out_small)
    assert jnp.allclose(out_small, ref, atol=2e-2, rtol=2e-2), \
        float(jnp.max(jnp.abs(out_small - ref)))

    print("KERNEL_OK")
</pallas_src>

<mosaic_0001>
module attributes {stable_mosaic.version = 11 : i64} {
  func.func @_linear_bias_kernel(%arg0: i32, %arg1: i32, %arg2: i32, %arg3: memref<32x128xbf16, #tpu.memory_space<vmem>>, %arg4: memref<128x384xbf16, #tpu.memory_space<vmem>>, %arg5: memref<1x384xf32, #tpu.memory_space<vmem>>, %arg6: memref<32x384xbf16, #tpu.memory_space<vmem>>, %arg7: memref<32x384xf32, #tpu.memory_space<vmem>>) attributes {dimension_semantics = [#tpu.dimension_semantics<parallel>, #tpu.dimension_semantics<parallel>, #tpu.dimension_semantics<arbitrary>], iteration_bounds = array<i64: 1, 1, 1>, scalar_prefetch = 0 : i64, scratch_operands = 1 : i64, tpu.core_type = #tpu.core_type<tc>, window_params = [{transform_indices = @transform_0, window_bounds = array<i64: 32, 128>}, {transform_indices = @transform_1, window_bounds = array<i64: 128, 384>}, {transform_indices = @transform_2, window_bounds = array<i64: 1, 384>}, {transform_indices = @transform_3, window_bounds = array<i64: 32, 384>}]} {
    %c0_i32 = arith.constant 0 : i32
    %0 = arith.cmpi eq, %arg2, %c0_i32 : i32
    %1 = arith.extui %0 : i1 to i32
    %c0_i32_0 = arith.constant 0 : i32
    %2 = arith.cmpi ne, %1, %c0_i32_0 : i32
    scf.if %2 {
      %cst_10 = arith.constant 0.000000e+00 : f32
      %12 = vector.broadcast %cst_10 : f32 to vector<32x384xf32>
      %c0_11 = arith.constant 0 : index
      %c0_12 = arith.constant 0 : index
      %13 = vector.load %arg7[%c0_11, %c0_12] : memref<32x384xf32, #tpu.memory_space<vmem>>, vector<32x384xf32>
      tpu.vector_store %arg7[%c0_11, %c0_12], %12 {strides = array<i32>} : memref<32x384xf32, #tpu.memory_space<vmem>>, vector<32x384xf32>,
    } else {
    }
    %c0 = arith.constant 0 : index
    %c0_1 = arith.constant 0 : index
    %3 = vector.load %arg7[%c0, %c0_1] : memref<32x384xf32, #tpu.memory_space<vmem>>, vector<32x384xf32>
    %c0_2 = arith.constant 0 : index
    %c0_3 = arith.constant 0 : index
    %4 = vector.load %arg3[%c0_2, %c0_3] : memref<32x128xbf16, #tpu.memory_space<vmem>>, vector<32x128xbf16>
    %c0_4 = arith.constant 0 : index
    %c0_5 = arith.constant 0 : index
    %5 = vector.load %arg4[%c0_4, %c0_5] : memref<128x384xbf16, #tpu.memory_space<vmem>>, vector<128x384xbf16>
    %cst = arith.constant dense<0.000000e+00> : vector<32x384xf32>
    %6 = tpu.matmul %4, %5, %cst {dimension_numbers = #tpu.dot_dimension_numbers<[1], [0], [0], [1], [0, 0, 1, 1], [], []>} : vector<32x128xbf16>, vector<128x384xbf16>, vector<32x384xf32> -> vector<32x384xf32>
    %7 = arith.addf %3, %6 : vector<32x384xf32>
    %c0_6 = arith.constant 0 : index
    %c0_7 = arith.constant 0 : index
    %8 = vector.load %arg7[%c0_6, %c0_7] : memref<32x384xf32, #tpu.memory_space<vmem>>, vector<32x384xf32>
    tpu.vector_store %arg7[%c0_6, %c0_7], %7 {strides = array<i32>} : memref<32x384xf32, #tpu.memory_space<vmem>>, vector<32x384xf32>,
    %c0_i32_8 = arith.constant 0 : i32
    %9 = arith.cmpi eq, %arg2, %c0_i32_8 : i32
    %10 = arith.extui %9 : i1 to i32
    %c0_i32_9 = arith.constant 0 : i32
    %11 = arith.cmpi ne, %10, %c0_i32_9 : i32
    scf.if %11 {
      %c0_10 = arith.constant 0 : index
      %c0_11 = arith.constant 0 : index
      %12 = vector.load %arg7[%c0_10, %c0_11] : memref<32x384xf32, #tpu.memory_space<vmem>>, vector<32x384xf32>
      %c0_12 = arith.constant 0 : index
      %c0_13 = arith.constant 0 : index
      %13 = vector.load %arg5[%c0_12, %c0_13] : memref<1x384xf32, #tpu.memory_space<vmem>>, vector<1x384xf32>
      %14 = vector.broadcast %13 : vector<1x384xf32> to vector<32x384xf32>
      %15 = arith.addf %12, %14 : vector<32x384xf32>
      %16 = arith.truncf %15 : vector<32x384xf32> to vector<32x384xbf16>
      %c0_14 = arith.constant 0 : index
      %c0_15 = arith.constant 0 : index
      %17 = vector.load %arg6[%c0_14, %c0_15] : memref<32x384xbf16, #tpu.memory_space<vmem>>, vector<32x384xbf16>
      tpu.vector_store %arg6[%c0_14, %c0_15], %16 {strides = array<i32>} : memref<32x384xbf16, #tpu.memory_space<vmem>>, vector<32x384xbf16>,
    } else {
    }
    return
  }
  func.func @transform_0(%arg0: i32, %arg1: i32, %arg2: i32) -> (i32, i32) {
    %c0_i32 = arith.constant 0 : i32
    return %arg0, %arg2 : i32, i32
  }
  func.func @transform_1(%arg0: i32, %arg1: i32, %arg2: i32) -> (i32, i32) {
    %c0_i32 = arith.constant 0 : i32
    return %arg2, %arg1 : i32, i32
  }
  func.func @transform_2(%arg0: i32, %arg1: i32, %arg2: i32) -> (i32, i32) {
    %c0_i32 = arith.constant 0 : i32
    %c0_i32_0 = arith.constant 0 : i32
    return %c0_i32, %arg1 : i32, i32
  }
  func.func @transform_3(%arg0: i32, %arg1: i32, %arg2: i32) -> (i32, i32) {
    %c0_i32 = arith.constant 0 : i32
    return %arg0, %arg1 : i32, i32
  }
}

</mosaic_0001>

<llo_original>
// kernel: tpu_custom_call.1
$region0: #{tpu_custom_call.1}
  #allocation0 [shape = 'u32[]', space=smem, size = 0x4, offset = 0x4, fixed_abs, tag = 'smem constant byte address 0x4 - core index']
  #allocation1 [shape = 'u32[144,128]{1,0:T(1,128)}', space=vmem, size = 0x12000, scoped, tag = 'internal scratch']
  #allocation2 [shape = 'f32[32,384]{1,0:T(8,128)}', space=vmem, size = 0xc000, scoped, tag = 'scratch operand']
  %s0 = inlined_call_operand.hbm [shape: bf16[32,128], index: 0, kind: input, shape index: {}]
  %s1 = inlined_call_operand.hbm [shape: bf16[128,384], index: 1, kind: input, shape index: {}]
  %s2 = inlined_call_operand.vmem [shape: f32[1,384], index: 2, kind: input, shape index: {}]
  %s3 = inlined_call_operand.hbm [shape: bf16[32,384], index: 3, kind: output, shape index: {}]
  %s4 = sld [smem:[#allocation0]]
  $region38: #{tpu_custom_call.1} parent=0
    _
  %s6 = ssub.s32 1, %s4
  %s7 = scalar_select 0, %s6, %s4
  $region1: #{tpu_custom_call.1} parent=0
    #allocation3 [shape = 'u8[8192]{0}', space=vmem, size = 0x2000, scoped, tag = 'input window, operand 0, single buffered']
    #allocation4 [shape = 's32[1]{0}', space=sflag, size = 0x4, scoped, tag = 'scoped memory for tpu_custom_call.1']
    #allocation5 [shape = 's32[1]{0}', space=sflag, size = 0x4, scoped, tag = 'scoped memory for tpu_custom_call.1']
    #allocation6 [shape = 'u8[98304]{0}', space=vmem, size = 0x18000, scoped, tag = 'input window, operand 1, single buffered']
    #allocation7 [shape = 's32[1]{0}', space=sflag, size = 0x4, scoped, tag = 'scoped memory for tpu_custom_call.1']
    #allocation8 [shape = 'u8[24576]{0}', space=vmem, size = 0x6000, scoped, tag = 'output window, operand 0, single buffered']
    %8 = vsyncpa [#allocation4], 0
    %9 = vsyncpa [#allocation7], 0
    %10 = vsyncpa [#allocation5], 0
    // Predicated region
    $region2: #{tpu_custom_call.1} parent=1 // pred_check
      _
    $region3: #{tpu_custom_call.1} parent=1 // pred_check_branch
      %12 = sbr.rel (0) target = $region5
    $region4: #{tpu_custom_call.1} parent=1 // pred_region
      %s14 = ssub.s32 256, 256
      %15 = vsyncadd [#allocation4], %s14
      %s16 = sshll.u32 [#allocation3], 4
      %s17 = int_to_ptr.vmem [resolvable:$true] %s16
      %22 = dma.hbm_to_vmem [thread:$0]  %s0, 256, %s17, [#allocation4], 64, 64, 4
    $region5: #{tpu_custom_call.1} parent=1 // pred_fallthru
      _
    // Predicated region
    $region6: #{tpu_custom_call.1} parent=1 // pred_check
      _
    $region7: #{tpu_custom_call.1} parent=1 // pred_check_branch
      %24 = sbr.rel (0) target = $region9
    $region8: #{tpu_custom_call.1} parent=1 // pred_region
      %s26 = ssub.s32 3072, 3072
      %27 = vsyncadd [#allocation7], %s26
      %s28 = sshll.u32 [#allocation6], 4
      %s29 = int_to_ptr.vmem [resolvable:$true] %s28
      %34 = dma.hbm_to_vmem [thread:$0]  %s1, 3072, %s29, [#allocation7], 192, 192, 12
    $region9: #{tpu_custom_call.1} parent=1 // pred_fallthru
      _
    // Predicated region
    $region10: #{tpu_custom_call.1} parent=1 // pred_check
      _
    $region11: #{tpu_custom_call.1} parent=1 // pred_check_branch
      %36 = sbr.rel (0) target = $region13
    $region12: #{tpu_custom_call.1} parent=1 // pred_region
      _
    $region13: #{tpu_custom_call.1} parent=1 // pred_fallthru
      _
    // Predicated region
    $region14: #{tpu_custom_call.1} parent=1 // pred_check
      _
    $region15: #{tpu_custom_call.1} parent=1 // pred_check_branch
      %38 = sbr.rel (0) target = $region17
    $region16: #{tpu_custom_call.1} parent=1 // pred_region
      %39 = dma.done [#allocation4], 256
    $region17: #{tpu_custom_call.1} parent=1 // pred_fallthru
      _
    // Predicated region
    $region18: #{tpu_custom_call.1} parent=1 // pred_check
      _
    $region19: #{tpu_custom_call.1} parent=1 // pred_check_branch
      %41 = sbr.rel (0) target = $region21
    $region20: #{tpu_custom_call.1} parent=1 // pred_region
      %42 = dma.done [#allocation7], 3072
    $region21: #{tpu_custom_call.1} parent=1 // pred_fallthru
      _
    %p44 = scmp.eq.s32.totalorder 0, 0
    // Predicated region
    $region22: #{tpu_custom_call.1} parent=1 // pred_check
      %p45 = pneg %p44
    $region23: #{tpu_custom_call.1} parent=1 // pred_check_branch
      %47 = sbr.rel (%p45) target = $region25
    $region24: #{tpu_custom_call.1} parent=1 // pred_region
      %48 = vst [vmem:[#allocation2] sm:$0xff] 0.0
      %49 = vst [vmem:[#allocation2 + $0x8] sm:$0xff] 0.0
      %50 = vst [vmem:[#allocation2 + $0x10] sm:$0xff] 0.0
      %51 = vst [vmem:[#allocation2 + $0x18] sm:$0xff] 0.0
      %52 = vst [vmem:[#allocation2 + $0x20] sm:$0xff] 0.0
      %53 = vst [vmem:[#allocation2 + $0x28] sm:$0xff] 0.0
      %54 = vst [vmem:[#allocation2 + $0x30] sm:$0xff] 0.0
      %55 = vst [vmem:[#allocation2 + $0x38] sm:$0xff] 0.0
      %56 = vst [vmem:[#allocation2 + $0x40] sm:$0xff] 0.0
      %57 = vst [vmem:[#allocation2 + $0x48] sm:$0xff] 0.0
      %58 = vst [vmem:[#allocation2 + $0x50] sm:$0xff] 0.0
      %59 = vst [vmem:[#allocation2 + $0x58] sm:$0xff] 0.0
    $region25: #{tpu_custom_call.1} parent=1 // pred_fallthru
      _
    %v60 = vld [vmem:[#allocation2] sm:$0xff]
    %v61 = vld [vmem:[#allocation2 + $0x8] sm:$0xff]
    %v62 = vld [vmem:[#allocation2 + $0x10] sm:$0xff]
    %v63 = vld [vmem:[#allocation2 + $0x18] sm:$0xff]
    %v64 = vld [vmem:[#allocation2 + $0x20] sm:$0xff]
    %v65 = vld [vmem:[#allocation2 + $0x28] sm:$0xff]
    %v66 = vld [vmem:[#allocation2 + $0x30] sm:$0xff]
    %v67 = vld [vmem:[#allocation2 + $0x38] sm:$0xff]
    %v68 = vld [vmem:[#allocation2 + $0x40] sm:$0xff]
    %v69 = vld [vmem:[#allocation2 + $0x48] sm:$0xff]
    %v70 = vld [vmem:[#allocation2 + $0x50] sm:$0xff]
    %v71 = vld [vmem:[#allocation2 + $0x58] sm:$0xff]
    %v72 = vld [vmem:[#allocation3] sm:$0xf]
    %v73 = vld [vmem:[#allocation3 + $0x4] sm:$0xf]
    %v74 = vld [vmem:[#allocation3 + $0x8] sm:$0xf]
    %v75 = vld [vmem:[#allocation3 + $0xc] sm:$0xf]
    %v76 = vld [vmem:[#allocation6] sm:$0xff]
    %v77 = vld [vmem:[#allocation6 + $0x8] sm:$0xf]
    %v78 = vld [vmem:[#allocation6 + $0xc] sm:$0xff]
    %v79 = vld [vmem:[#allocation6 + $0x14] sm:$0xf]
    %v80 = vld [vmem:[#allocation6 + $0x18] sm:$0xff]
    %v81 = vld [vmem:[#allocation6 + $0x20] sm:$0xf]
    %v82 = vld [vmem:[#allocation6 + $0x24] sm:$0xff]
    %v83 = vld [vmem:[#allocation6 + $0x2c] sm:$0xf]
    %v84 = vld [vmem:[#allocation6 + $0x30] sm:$0xff]
    %v85 = vld [vmem:[#allocation6 + $0x38] sm:$0xf]
    %v86 = vld [vmem:[#allocation6 + $0x3c] sm:$0xff]
    %v87 = vld [vmem:[#allocation6 + $0x44] sm:$0xf]
    %v88 = vld [vmem:[#allocation6 + $0x48] sm:$0xff]
    %v89 = vld [vmem:[#allocation6 + $0x50] sm:$0xf]
    %v90 = vld [vmem:[#allocation6 + $0x54] sm:$0xff]
    %v91 = vld [vmem:[#allocation6 + $0x5c] sm:$0xf]
    %v92 = vld [vmem:[#allocation6 + $0x60] sm:$0xff]
    %v93 = vld [vmem:[#allocation6 + $0x68] sm:$0xf]
    %v94 = vld [vmem:[#allocation6 + $0x6c] sm:$0xff]
    %v95 = vld [vmem:[#allocation6 + $0x74] sm:$0xf]
    %v96 = vld [vmem:[#allocation6 + $0x78] sm:$0xff]
    %v97 = vld [vmem:[#allocation6 + $0x80] sm:$0xf]
    %v98 = vld [vmem:[#allocation6 + $0x84] sm:$0xff]
    %v99 = vld [vmem:[#allocation6 + $0x8c] sm:$0xf]
    %v100 = vld [vmem:[#allocation6 + $0x90] sm:$0xff]
    %v101 = vld [vmem:[#allocation6 + $0x98] sm:$0xf]
    %v102 = vld [vmem:[#allocation6 + $0x9c] sm:$0xff]
    %v103 = vld [vmem:[#allocation6 + $0xa4] sm:$0xf]
    %v104 = vld [vmem:[#allocation6 + $0xa8] sm:$0xff]
    %v105 = vld [vmem:[#allocation6 + $0xb0] sm:$0xf]
    %v106 = vld [vmem:[#allocation6 + $0xb4] sm:$0xff]
    %v107 = vld [vmem:[#allocation6 + $0xbc] sm:$0xf]
    %v112 = vunpack.c.l.b16 %v72
    %v113 = vunpack.c.l.b16 %v73
    %v114 = vunpack.c.l.b16 %v74
    %v115 = vunpack.c.l.b16 %v75
    %v116 = vpack.c.b16 %v113, %v112
    %v117 = vpack.c.b16 %v115, %v114
    %v152 = vunpack.c.l.b16 %v76
    %v153 = vunpack.c.h.b16 %v76
    %v154 = vunpack.c.l.b16 %v77
    %v155 = vunpack.c.l.b16 %v78
    %v156 = vunpack.c.h.b16 %v78
    %v157 = vunpack.c.l.b16 %v79
    %v158 = vunpack.c.l.b16 %v80
    %v159 = vunpack.c.h.b16 %v80
    %v160 = vunpack.c.l.b16 %v81
    %v161 = vunpack.c.l.b16 %v82
    %v162 = vunpack.c.h.b16 %v82
    %v163 = vunpack.c.l.b16 %v83
    %v164 = vunpack.c.l.b16 %v84
    %v165 = vunpack.c.h.b16 %v84
    %v166 = vunpack.c.l.b16 %v85
    %v167 = vunpack.c.l.b16 %v86
    %v168 = vunpack.c.h.b16 %v86
    %v169 = vunpack.c.l.b16 %v87
    %v170 = vunpack.c.l.b16 %v88
    %v171 = vunpack.c.h.b16 %v88
    %v172 = vunpack.c.l.b16 %v89
    %v173 = vunpack.c.l.b16 %v90
    %v174 = vunpack.c.h.b16 %v90
    %v175 = vunpack.c.l.b16 %v91
    %v176 = vunpack.c.l.b16 %v92
    %v177 = vunpack.c.h.b16 %v92
    %v178 = vunpack.c.l.b16 %v93
    %v179 = vunpack.c.l.b16 %v94
    %v180 = vunpack.c.h.b16 %v94
    %v181 = vunpack.c.l.b16 %v95
    %v182 = vunpack.c.l.b16 %v96
    %v183 = vunpack.c.h.b16 %v96
    %v184 = vunpack.c.l.b16 %v97
    %v185 = vunpack.c.l.b16 %v98
    %v186 = vunpack.c.h.b16 %v98
    %v187 = vunpack.c.l.b16 %v99
    %v188 = vunpack.c.l.b16 %v100
    %v189 = vunpack.c.h.b16 %v100
    %v190 = vunpack.c.l.b16 %v101
    %v191 = vunpack.c.l.b16 %v102
    %v192 = vunpack.c.h.b16 %v102
    %v193 = vunpack.c.l.b16 %v103
    %v194 = vunpack.c.l.b16 %v104
    %v195 = vunpack.c.h.b16 %v104
    %v196 = vunpack.c.l.b16 %v105
    %v197 = vunpack.c.l.b16 %v106
    %v198 = vunpack.c.h.b16 %v106
    %v199 = vunpack.c.l.b16 %v107
    %v200 = vpack.c.b16 %v155, %v152
    %v201 = vpack.c.b16 %v156, %v153
    %v202 = vpack.c.b16 %v157, %v154
    %v203 = vpack.c.b16 %v161, %v158
    %v204 = vpack.c.b16 %v162, %v159
    %v205 = vpack.c.b16 %v163, %v160
    %v206 = vpack.c.b16 %v167, %v164
    %v207 = vpack.c.b16 %v168, %v165
    %v208 = vpack.c.b16 %v169, %v166
    %v209 = vpack.c.b16 %v173, %v170
    %v210 = vpack.c.b16 %v174, %v171
    %v211 = vpack.c.b16 %v175, %v172
    %v212 = vpack.c.b16 %v179, %v176
    %v213 = vpack.c.b16 %v180, %v177
    %v214 = vpack.c.b16 %v181, %v178
    %v215 = vpack.c.b16 %v185, %v182
    %v216 = vpack.c.b16 %v186, %v183
    %v217 = vpack.c.b16 %v187, %v184
    %v218 = vpack.c.b16 %v191, %v188
    %v219 = vpack.c.b16 %v192, %v189
    %v220 = vpack.c.b16 %v193, %v190
    %v221 = vpack.c.b16 %v197, %v194
    %v222 = vpack.c.b16 %v198, %v195
    %v223 = vpack.c.b16 %v199, %v196
    %248 = vmatprep.subr.bf16.mxu0 %v201
    %249 = vmatpush1.bf16.msra.mxu0 %v200
    %250 = vmatprep.subr.bf16.mxu0 %v204
    %251 = vmatpush1.bf16.msra.mxu0 %v203
    %252 = vmatprep.subr.bf16.mxu0 %v207
    %253 = vmatpush1.bf16.msra.mxu0 %v206
    %254 = vmatprep.subr.bf16.mxu0 %v210
    %255 = vmatpush1.bf16.msra.mxu0 %v209
    %256 = vmatprep.subr.bf16.mxu0 %v213
    %257 = vmatpush1.bf16.msra.mxu0 %v212
    %258 = vmatprep.subr.bf16.mxu0 %v216
    %259 = vmatpush1.bf16.msra.mxu0 %v215
    %260 = vmatprep.subr.bf16.mxu0 %v219
    %261 = vmatpush1.bf16.msra.mxu0 %v218
    %262 = vmatprep.subr.bf16.mxu0 %v222
    %263 = vmatpush1.bf16.msra.mxu0 %v221
    %264 = vmatprep.subr.bf16.mxu0 0
    %265 = vmatpush1.bf16.msra.mxu0 0
    %266 = vmatprep.subr.bf16.mxu0 0
    %267 = vmatpush1.bf16.msra.mxu0 0
    %268 = vmatprep.subr.bf16.mxu0 0
    %269 = vmatpush1.bf16.msra.mxu0 0
    %270 = vmatprep.subr.bf16.mxu0 0
    %271 = vmatpush1.bf16.msra.mxu0 0
    %272 = vmatprep.subr.bf16.mxu0 0
    %273 = vmatpush1.bf16.msra.mxu0 0
    %274 = vmatprep.subr.bf16.mxu0 0
    %275 = vmatpush1.bf16.msra.mxu0 0
    %276 = vmatprep.subr.bf16.mxu0 0
    %277 = vmatpush1.bf16.msra.mxu0 0
    %278 = vmatprep.subr.bf16.mxu0 0
    %279 = vmatpush1.bf16.msra.mxu0 0
    %280 = vmatprep.mubr.bf16.mxu0 0
    %281 = vmatmul.mubr.bf16.gmra.mrb[0].mxu0 %v116
    %v282 = vpop.f32.mrb[0].mxu0
    %v283 = vadd.f32 0.0, %v282
    %v284 = vpop.f32.mrb[0].mxu0
    %v285 = vadd.f32 0.0, %v284
    %v286 = vpop.f32.mrb[0].mxu0
    %v287 = vadd.f32 0.0, %v286
    %v288 = vpop.f32.mrb[0].mxu0
    %v289 = vadd.f32 0.0, %v288
    %290 = vmatprep.mubr.bf16.mxu0 0
    %291 = vmatmul.mubr.bf16.gmra.mrb[0].mxu0 %v117
    %v292 = vpop.f32.mrb[0].mxu0
    %v293 = vadd.f32 0.0, %v292
    %v294 = vpop.f32.mrb[0].mxu0
    %v295 = vadd.f32 0.0, %v294
    %v296 = vpop.f32.mrb[0].mxu0
    %v297 = vadd.f32 0.0, %v296
    %v298 = vpop.f32.mrb[0].mxu0
    %v299 = vadd.f32 0.0, %v298
    %300 = vdwg.mxu0
    %301 = vmatprep.subr.bf16.mxu0 0
    %302 = vmatpush1.bf16.msra.mxu0 %v202
    %303 = vmatprep.subr.bf16.mxu0 0
    %304 = vmatpush1.bf16.msra.mxu0 %v205
    %305 = vmatprep.subr.bf16.mxu0 0
    %306 = vmatpush1.bf16.msra.mxu0 %v208
    %307 = vmatprep.subr.bf16.mxu0 0
    %308 = vmatpush1.bf16.msra.mxu0 %v211
    %309 = vmatprep.subr.bf16.mxu0 0
    %310 = vmatpush1.bf16.msra.mxu0 %v214
    %311 = vmatprep.subr.bf16.mxu0 0
    %312 = vmatpush1.bf16.msra.mxu0 %v217
    %313 = vmatprep.subr.bf16.mxu0 0
    %314 = vmatpush1.bf16.msra.mxu0 %v220
    %315 = vmatprep.subr.bf16.mxu0 0
    %316 = vmatpush1.bf16.msra.mxu0 %v223
    %317 = vmatprep.subr.bf16.mxu0 0
    %318 = vmatpush1.bf16.msra.mxu0 0
    %319 = vmatprep.subr.bf16.mxu0 0
    %320 = vmatpush1.bf16.msra.mxu0 0
    %321 = vmatprep.subr.bf16.mxu0 0
    %322 = vmatpush1.bf16.msra.mxu0 0
    %323 = vmatprep.subr.bf16.mxu0 0
    %324 = vmatpush1.bf16.msra.mxu0 0
    %325 = vmatprep.subr.bf16.mxu0 0
    %326 = vmatpush1.bf16.msra.mxu0 0
    %327 = vmatprep.subr.bf16.mxu0 0
    %328 = vmatpush1.bf16.msra.mxu0 0
    %329 = vmatprep.subr.bf16.mxu0 0
    %330 = vmatpush1.bf16.msra.mxu0 0
    %331 = vmatprep.subr.bf16.mxu0 0
    %332 = vmatpush1.bf16.msra.mxu0 0
    %333 = vmatprep.mubr.bf16.mxu0 0
    %334 = vmatmul.mubr.bf16.gmra.mrb[0].mxu0 %v116
    %v335 = vpop.f32.mrb[0].mxu0
    %v336 = vadd.f32 0.0, %v335
    %v337 = vpop.f32.mrb[0].mxu0
    %v338 = vpop.f32.mrb[0].mxu0
    %v339 = vadd.f32 0.0, %v338
    %v340 = vpop.f32.mrb[0].mxu0
    %341 = vmatprep.mubr.bf16.mxu0 0
    %342 = vmatmul.mubr.bf16.gmra.mrb[0].mxu0 %v117
    %v343 = vpop.f32.mrb[0].mxu0
    %v344 = vadd.f32 0.0, %v343
    %v345 = vpop.f32.mrb[0].mxu0
    %v346 = vpop.f32.mrb[0].mxu0
    %v347 = vadd.f32 0.0, %v346
    %v348 = vpop.f32.mrb[0].mxu0
    %349 = vdwg.mxu0
    %v350 = vadd.f32 %v60, %v283
    %v351 = vadd.f32 %v61, %v285
    %v352 = vadd.f32 %v62, %v336
    %v353 = vadd.f32 %v63, %v287
    %v354 = vadd.f32 %v64, %v289
    %v355 = vadd.f32 %v65, %v339
    %v356 = vadd.f32 %v66, %v293
    %v357 = vadd.f32 %v67, %v295
    %v358 = vadd.f32 %v68, %v344
    %v359 = vadd.f32 %v69, %v297
    %v360 = vadd.f32 %v70, %v299
    %v361 = vadd.f32 %v71, %v347
    %362 = vst [vmem:[#allocation2] sm:$0xff] %v350
    %363 = vst [vmem:[#allocation2 + $0x8] sm:$0xff] %v351
    %364 = vst [vmem:[#allocation2 + $0x10] sm:$0xff] %v352
    %365 = vst [vmem:[#allocation2 + $0x18] sm:$0xff] %v353
    %366 = vst [vmem:[#allocation2 + $0x20] sm:$0xff] %v354
    %367 = vst [vmem:[#allocation2 + $0x28] sm:$0xff] %v355
    %368 = vst [vmem:[#allocation2 + $0x30] sm:$0xff] %v356
    %369 = vst [vmem:[#allocation2 + $0x38] sm:$0xff] %v357
    %370 = vst [vmem:[#allocation2 + $0x40] sm:$0xff] %v358
    %371 = vst [vmem:[#allocation2 + $0x48] sm:$0xff] %v359
    %372 = vst [vmem:[#allocation2 + $0x50] sm:$0xff] %v360
    %373 = vst [vmem:[#allocation2 + $0x58] sm:$0xff] %v361
    // Predicated region
    $region26: #{tpu_custom_call.1} parent=1 // pred_check
      %p374 = pneg %p44
    $region27: #{tpu_custom_call.1} parent=1 // pred_check_branch
      %376 = sbr.rel (%p374) target = $region29
    $region28: #{tpu_custom_call.1} parent=1 // pred_region
      %v377 = vld [vmem:[#allocation2] sm:$0xff]
      %v378 = vld [vmem:[#allocation2 + $0x8] sm:$0xff]
      %v379 = vld [vmem:[#allocation2 + $0x10] sm:$0xff]
      %v380 = vld [vmem:[#allocation2 + $0x18] sm:$0xff]
      %v381 = vld [vmem:[#allocation2 + $0x20] sm:$0xff]
      %v382 = vld [vmem:[#allocation2 + $0x28] sm:$0xff]
      %v383 = vld [vmem:[#allocation2 + $0x30] sm:$0xff]
      %v384 = vld [vmem:[#allocation2 + $0x38] sm:$0xff]
      %v385 = vld [vmem:[#allocation2 + $0x40] sm:$0xff]
      %v386 = vld [vmem:[#allocation2 + $0x48] sm:$0xff]
      %v387 = vld [vmem:[#allocation2 + $0x50] sm:$0xff]
      %v388 = vld [vmem:[#allocation2 + $0x58] sm:$0xff]
      %v389 = vld [vmem:[%s2] sm:$0x7]
      %v391 = vlaneseq
      %v392 = vshrl.u32 %v391, 7
      %v393 = vsub.s32 0, %v392
      %v394 = vrot.slane %v389, %v393
      %v395 = vlaneseq
      %v396 = vshrl.u32 %v395, 7
      %v397 = vsub.s32 1, %v396
      %v398 = vrot.slane %v389, %v397
      %v399 = vlaneseq
      %v400 = vshrl.u32 %v399, 7
      %v401 = vsub.s32 2, %v400
      %v402 = vrot.slane %v389, %v401
      %v406 = vadd.f32 %v377, %v394
      %v407 = vadd.f32 %v378, %v398
      %v408 = vadd.f32 %v379, %v402
      %v409 = vadd.f32 %v380, %v394
      %v410 = vadd.f32 %v381, %v398
      %v411 = vadd.f32 %v382, %v402
      %v412 = vadd.f32 %v383, %v394
      %v413 = vadd.f32 %v384, %v398
      %v414 = vadd.f32 %v385, %v402
      %v415 = vadd.f32 %v386, %v394
      %v416 = vadd.f32 %v387, %v398
      %v417 = vadd.f32 %v388, %v402
      %v418 = vpack.c.bf16 %v409, %v406
      %v419 = vpack.c.bf16 %v410, %v407
      %v420 = vpack.c.bf16 %v411, %v408
      %v421 = vpack.c.bf16 %v415, %v412
      %v422 = vpack.c.bf16 %v416, %v413
      %v423 = vpack.c.bf16 %v417, %v414
      %v430 = vunpack.c.l.b16 %v418
      %v431 = vunpack.c.l.b16 %v419
      %v432 = vunpack.c.l.b16 %v420
      %v433 = vunpack.c.h.b16 %v418
      %v434 = vunpack.c.h.b16 %v419
      %v435 = vunpack.c.h.b16 %v420
      %v436 = vunpack.c.l.b16 %v421
      %v437 = vunpack.c.l.b16 %v422
      %v438 = vunpack.c.l.b16 %v423
      %v439 = vunpack.c.h.b16 %v421
      %v440 = vunpack.c.h.b16 %v422
      %v441 = vunpack.c.h.b16 %v423
      %v442 = vpack.c.b16 %v431, %v430
      %v443 = vpack.c.b16 %v432, %v432
      %v444 = vpack.c.b16 %v434, %v433
      %v445 = vpack.c.b16 %v435, %v435
      %v446 = vpack.c.b16 %v437, %v436
      %v447 = vpack.c.b16 %v438, %v438
      %v448 = vpack.c.b16 %v440, %v439
      %v449 = vpack.c.b16 %v441, %v441
      %458 = vst [vmem:[#allocation8] sm:$0xff] %v442
      %459 = vst [vmem:[#allocation8 + $0x8] sm:$0xf] %v443
      %460 = vst [vmem:[#allocation8 + $0xc] sm:$0xff] %v444
      %461 = vst [vmem:[#allocation8 + $0x14] sm:$0xf] %v445
      %462 = vst [vmem:[#allocation8 + $0x18] sm:$0xff] %v446
      %463 = vst [vmem:[#allocation8 + $0x20] sm:$0xf] %v447
      %464 = vst [vmem:[#allocation8 + $0x24] sm:$0xff] %v448
      %465 = vst [vmem:[#allocation8 + $0x2c] sm:$0xf] %v449
    $region29: #{tpu_custom_call.1} parent=1 // pred_fallthru
      _
    // Predicated region
    $region30: #{tpu_custom_call.1} parent=1 // pred_check
      _
    $region31: #{tpu_custom_call.1} parent=1 // pred_check_branch
      %467 = sbr.rel (0) target = $region33
    $region32: #{tpu_custom_call.1} parent=1 // pred_region
      %s469 = ssub.s32 768, 768
      %470 = vsyncadd [#allocation5], %s469
      %s471 = sshll.u32 [#allocation8], 4
      %s472 = int_to_ptr.vmem [resolvable:$true] %s471
      %477 = dma.vmem_to_hbm [thread:$0]  %s472, 768, %s3, [#allocation5], 192, 192, 12
    $region33: #{tpu_custom_call.1} parent=1 // pred_fallthru
      _
    // Predicated region
    $region34: #{tpu_custom_call.1} parent=1 // pred_check
      _
    $region35: #{tpu_custom_call.1} parent=1 // pred_check_branch
      %479 = sbr.rel (0) target = $region37
    $region36: #{tpu_custom_call.1} parent=1 // pred_region
      %480 = dma.done [#allocation5], 768
    $region37: #{tpu_custom_call.1} parent=1 // pred_fallthru
      _
    %481 = vsyncpa [#allocation4], 1
    %482 = vsyncpa [#allocation7], 1
    %483 = vsyncpa [#allocation5], 1

</llo_original>
